<compile_context>
chip_gen: v7x
topology: tpu7x:2x2x1
jax: 0.10.0
libtpu: 0.0.40
codegen_flags: <defaults>
</compile_context>

<pallas_src>
import functools

import jax
import jax.numpy as jnp
from jax.experimental import pallas as pl
from jax.experimental.pallas import tpu as pltpu


def _swish_kernel(x_ref, o_ref, *, beta):
    x = x_ref[...]
    # swish(x) = x * sigmoid(beta * x); compute in f32 (no-op for f32 inputs,
    # protects bf16 inputs), cast back to the output dtype.
    xf = x.astype(jnp.float32)
    # NOTE: HBM-bound on v5e/v6e/v7x, so the numerically-stable jax.nn.sigmoid
    # is kept.  If a profile ever shows VALU as the saturated slot (v5e), swap
    # to: xf * pl.reciprocal(1.0 + jnp.exp(-beta * xf), approx=True) to push
    # the divide onto the EUP slot.
    y = xf * jax.nn.sigmoid(beta * xf)
    o_ref[...] = y.astype(o_ref.dtype)


# Lane-dense column widths to try (all multiples of 128), widest first.
_LANE_CANDIDATES = (8192, 4096, 2048, 1024, 512, 256, 128)
# Above this total size, force >=2 grid steps so v7x's 2 TCs both get work.
_MIN_SPLIT_BYTES = 2 * 1024 * 1024


def _chip_params():
    """Per-generation (per-buffer tile bytes, vmem_limit_bytes or None)."""
    try:
        kind = jax.devices()[0].device_kind.lower()
    except Exception:
        kind = ""
    if "v7" in kind or "7x" in kind:
        # ~3.2 TB/s HBM -> big tiles amortize the ~0.35us/step overhead.
        # 4 double-buffered tiles (24 MiB) + f32 in-kernel temporaries
        # (<=12 MiB for bf16 inputs) + headroom = 48 MiB < 64 MiB physical VMEM.
        return 6 * 1024 * 1024, 48 * 1024 * 1024
    if "v6" in kind:
        # 16 MiB of buffers + <=8 MiB f32 temporaries fits the 32 MiB default
        # scoped VMEM with no flag change.
        return 4 * 1024 * 1024, None
    # v5e and unknown chips: 2 MiB tiles are already past the HBM-roofline
    # knee and keep 4 buffers + temporaries inside the 16 MiB default scope.
    return 2 * 1024 * 1024, None


def _swish_2d(x2d, beta):
    rows, cols = x2d.shape
    itemsize = jnp.dtype(x2d.dtype).itemsize
    n = rows * cols
    tile_bytes, vmem_limit = _chip_params()

    # Pick block_rows so block_rows * cols * itemsize ~= tile_bytes; a multiple
    # of 32 satisfies the sublane tiling minimum for f32/bf16/int8 alike.
    block_rows = max(32, (tile_bytes // (cols * itemsize)) // 32 * 32)

    # Guarantee >=2 grid steps for arrays past ~2 MiB so the "parallel" row
    # axis can actually shard across v7x's two TensorCores.
    if n * itemsize > _MIN_SPLIT_BYTES and rows >= 64:
        half_rows = ((pl.cdiv(rows, 2) + 31) // 32) * 32
        block_rows = min(block_rows, half_rows)

    if block_rows >= rows:
        block_rows = rows  # full-extent block: allowed for any row count

    grid = (pl.cdiv(rows, block_rows),)  # partial last block is masked by Pallas

    return pl.pallas_call(
        # beta is a constructor constant of the module; baking it in via
        # partial retraces only when beta itself changes.
        functools.partial(_swish_kernel, beta=float(beta)),
        out_shape=jax.ShapeDtypeStruct((rows, cols), x2d.dtype),
        grid_spec=pltpu.PrefetchScalarGridSpec(
            num_scalar_prefetch=0,
            grid=grid,
            in_specs=[pl.BlockSpec((block_rows, cols), lambda i: (i, 0))],
            out_specs=pl.BlockSpec((block_rows, cols), lambda i: (i, 0)),
        ),
        compiler_params=pltpu.CompilerParams(
            dimension_semantics=("parallel",),
            vmem_limit_bytes=vmem_limit,
        ),
        cost_estimate=pl.CostEstimate(
            flops=5 * n,
            transcendentals=n,
            bytes_accessed=2 * n * itemsize,
        ),
    )(x2d)


def _swish_tail(x1d, beta):
    """Tiny (<128 element) tail: full-extent block bypasses the (8,128) rule."""
    t = x1d.shape[0]
    out = pl.pallas_call(
        functools.partial(_swish_kernel, beta=float(beta)),
        out_shape=jax.ShapeDtypeStruct((1, t), x1d.dtype),
    )(jnp.reshape(x1d, (1, t)))
    return jnp.reshape(out, (t,))


def swish(x, beta=1.0):
    """Pallas TPU implementation of Swish: x * sigmoid(beta * x)."""
    orig_shape = x.shape
    n = x.size
    if n == 0:
        return x

    # Fast path: size divisible by a lane multiple -> reshape is a free view,
    # no pad / no slice, so the only HBM traffic is the kernel's own read+write.
    cols = next((c for c in _LANE_CANDIDATES if n % c == 0), None)
    if cols is not None:
        out2d = _swish_2d(jnp.reshape(x, (n // cols, cols)), beta)
        return jnp.reshape(out2d, orig_shape)

    # Rare fallback (size not a multiple of 128): run the 128-aligned prefix
    # through the fast 2D path and the <128-element tail through a tiny
    # full-extent-block kernel -- no full-array pad or slice passes.
    x_flat = jnp.reshape(x, (-1,))
    n_main = (n // 128) * 128
    parts = []
    if n_main > 0:
        main = _swish_2d(jnp.reshape(x_flat[:n_main], (n_main // 128, 128)), beta)
        parts.append(jnp.reshape(main, (-1,)))
    parts.append(_swish_tail(x_flat[n_main:], beta))
    out_flat = parts[0] if len(parts) == 1 else jnp.concatenate(parts)
    return jnp.reshape(out_flat, orig_shape)


def swish_ref(x, beta=1.0):
    xf = x.astype(jnp.float32)
    return (xf * jax.nn.sigmoid(beta * xf)).astype(x.dtype)


if __name__ == "__main__":
    key = jax.random.PRNGKey(0)
    # Small NCHW-style input consistent with typical usage of the activation.
    x = jax.random.normal(key, (2, 4, 16, 16), dtype=jnp.float32)

    beta = 1.0
    y = jax.block_until_ready(swish(x, beta=beta))
    y_ref = swish_ref(x, beta=beta)
    assert y.shape == x.shape and y.dtype == x.dtype
    assert jnp.allclose(y, y_ref, atol=1e-6, rtol=1e-6)

    # Odd sizes: tail-only path (<128 elements) ...
    x_odd = jax.random.normal(jax.random.PRNGKey(1), (3, 5, 7), dtype=jnp.float32)
    y_odd = jax.block_until_ready(swish(x_odd, beta=0.5))
    assert jnp.allclose(y_odd, swish_ref(x_odd, beta=0.5), atol=1e-6, rtol=1e-6)

    # ... and prefix+tail path (>=128 elements, not a multiple of 128).
    x_odd2 = jax.random.normal(jax.random.PRNGKey(2), (7, 19), dtype=jnp.float32)
    y_odd2 = jax.block_until_ready(swish(x_odd2, beta=1.0))
    assert jnp.allclose(y_odd2, swish_ref(x_odd2, beta=1.0), atol=1e-6, rtol=1e-6)

    # bf16 input exercises the f32-compute / cast-back path.
    x_bf = jax.random.normal(jax.random.PRNGKey(3), (8, 256), dtype=jnp.bfloat16)
    y_bf = jax.block_until_ready(swish(x_bf))
    assert y_bf.dtype == jnp.bfloat16
    assert jnp.allclose(y_bf.astype(jnp.float32),
                        swish_ref(x_bf).astype(jnp.float32), atol=1e-2, rtol=1e-2)

    print("KERNEL_OK")
</pallas_src>

<mosaic_0001>
module attributes {stable_mosaic.version = 11 : i64} {
  func.func @_swish_kernel(%arg0: i32, %arg1: memref<1x2048xf32, #tpu.memory_space<vmem>>, %arg2: memref<1x2048xf32, #tpu.memory_space<vmem>>) attributes {dimension_semantics = [#tpu.dimension_semantics<parallel>], iteration_bounds = array<i64: 1>, scalar_prefetch = 0 : i64, scratch_operands = 0 : i64, tpu.core_type = #tpu.core_type<tc>, window_params = [{transform_indices = @transform_0, window_bounds = array<i64: 1, 2048>}, {transform_indices = @transform_1, window_bounds = array<i64: 1, 2048>}]} {
    %c0 = arith.constant 0 : index
    %c0_0 = arith.constant 0 : index
    %0 = vector.load %arg1[%c0, %c0_0] : memref<1x2048xf32, #tpu.memory_space<vmem>>, vector<1x2048xf32>
    %cst = arith.constant 1.000000e+00 : f32
    %1 = vector.broadcast %cst : f32 to vector<1x2048xf32>
    %2 = arith.mulf %1, %0 : vector<1x2048xf32>
    %3 = arith.negf %2 : vector<1x2048xf32>
    %4 = math.exp %3 : vector<1x2048xf32>
    %cst_1 = arith.constant 1.000000e+00 : f32
    %5 = vector.broadcast %cst_1 : f32 to vector<1x2048xf32>
    %6 = arith.addf %5, %4 : vector<1x2048xf32>
    %7 = arith.divf %5, %6 : vector<1x2048xf32>
    %8 = arith.mulf %0, %7 : vector<1x2048xf32>
    %c0_2 = arith.constant 0 : index
    %c0_3 = arith.constant 0 : index
    %9 = vector.load %arg2[%c0_2, %c0_3] : memref<1x2048xf32, #tpu.memory_space<vmem>>, vector<1x2048xf32>
    tpu.vector_store %arg2[%c0_2, %c0_3], %8 {strides = array<i32>} : memref<1x2048xf32, #tpu.memory_space<vmem>>, vector<1x2048xf32>,
    return
  }
  func.func @transform_0(%arg0: i32) -> (i32, i32) {
    %c0_i32 = arith.constant 0 : i32
    %c0_i32_0 = arith.constant 0 : i32
    return %arg0, %c0_i32 : i32, i32
  }
  func.func @transform_1(%arg0: i32) -> (i32, i32) {
    %c0_i32 = arith.constant 0 : i32
    %c0_i32_0 = arith.constant 0 : i32
    return %arg0, %c0_i32 : i32, i32
  }
}

</mosaic_0001>

<llo_original>
// kernel: tpu_custom_call.1
$region0: #{tpu_custom_call.1}
  #allocation0 [shape = 'u32[]', space=smem, size = 0x4, offset = 0x4, fixed_abs, tag = 'smem constant byte address 0x4 - core index']
  #allocation1 [shape = 'u32[144,128]{1,0:T(1,128)}', space=vmem, size = 0x12000, scoped, tag = 'internal scratch']
  %s0 = inlined_call_operand.hbm [shape: f32[1,2048], index: 0, kind: input, shape index: {}]
  %s1 = inlined_call_operand.hbm [shape: f32[1,2048], index: 1, kind: output, shape index: {}]
  %s2 = sld [smem:[#allocation0]]
  $region18: #{tpu_custom_call.1} parent=0
    _
  %s4 = ssub.s32 1, %s2
  %s5 = scalar_select 0, %s4, %s2
  $region1: #{tpu_custom_call.1} parent=0
    #allocation2 [shape = 'u8[8192]{0}', space=vmem, size = 0x2000, scoped, tag = 'input window, operand 0, single buffered']
    #allocation3 [shape = 's32[1]{0}', space=sflag, size = 0x4, scoped, tag = 'scoped memory for tpu_custom_call.1']
    #allocation4 [shape = 's32[1]{0}', space=sflag, size = 0x4, scoped, tag = 'scoped memory for tpu_custom_call.1']
    #allocation5 [shape = 'u8[8192]{0}', space=vmem, size = 0x2000, scoped, tag = 'output window, operand 0, single buffered']
    %6 = vsyncpa [#allocation3], 0
    %7 = vsyncpa [#allocation4], 0
    // Predicated region
    $region2: #{tpu_custom_call.1} parent=1 // pred_check
      _
    $region3: #{tpu_custom_call.1} parent=1 // pred_check_branch
      %9 = sbr.rel (0) target = $region5
    $region4: #{tpu_custom_call.1} parent=1 // pred_region
      %s11 = ssub.s32 256, 256
      %12 = vsyncadd [#allocation3], %s11
      %s14 = sshll.u32 [#allocation2], 4
      %s15 = int_to_ptr.vmem [resolvable:$true] %s14
      %17 = dma.hbm_to_vmem [thread:$0]  %s0, 256, %s15, [#allocation3]
    $region5: #{tpu_custom_call.1} parent=1 // pred_fallthru
      _
    // Predicated region
    $region6: #{tpu_custom_call.1} parent=1 // pred_check
      _
    $region7: #{tpu_custom_call.1} parent=1 // pred_check_branch
      %19 = sbr.rel (0) target = $region9
    $region8: #{tpu_custom_call.1} parent=1 // pred_region
      %20 = dma.done [#allocation3], 256
    $region9: #{tpu_custom_call.1} parent=1 // pred_fallthru
      _
    %v21 = vld [vmem:[#allocation2] sm:$0xff]
    %v22 = vld [vmem:[#allocation2 + $0x8] sm:$0xff]
    %v23 = vxor.u32 %v21, 2147483648
    %v24 = vxor.u32 %v22, 2147483648
    %v25 = vmul.f32 %v23, 1.442695
    %v26 = vpow.pop %v25
    %v27 = vmul.f32 %v24, 1.442695
    %v28 = vpow.pop %v27
    %v29 = vadd.f32 %v26, 1.0
    %v30 = vadd.f32 %v28, 1.0
    %v31 = vrcp.pop %v29
    %v32 = vmul.f32 1.0, %v31
    %v33 = vrcp.pop %v30
    %v34 = vmul.f32 1.0, %v33
    %v35 = vmul.f32 %v21, %v32
    %v36 = vmul.f32 %v22, %v34
    %37 = vst [vmem:[#allocation5] sm:$0xff] %v35
    %38 = vst [vmem:[#allocation5 + $0x8] sm:$0xff] %v36
    // Predicated region
    $region10: #{tpu_custom_call.1} parent=1 // pred_check
      _
    $region11: #{tpu_custom_call.1} parent=1 // pred_check_branch
      %40 = sbr.rel (0) target = $region13
    $region12: #{tpu_custom_call.1} parent=1 // pred_region
      %s42 = ssub.s32 256, 256
      %43 = vsyncadd [#allocation4], %s42
      %s45 = sshll.u32 [#allocation5], 4
      %s46 = int_to_ptr.vmem [resolvable:$true] %s45
      %48 = dma.vmem_to_hbm [thread:$0]  %s46, 256, %s1, [#allocation4]
    $region13: #{tpu_custom_call.1} parent=1 // pred_fallthru
      _
    // Predicated region
    $region14: #{tpu_custom_call.1} parent=1 // pred_check
      _
    $region15: #{tpu_custom_call.1} parent=1 // pred_check_branch
      %50 = sbr.rel (0) target = $region17
    $region16: #{tpu_custom_call.1} parent=1 // pred_region
      %51 = dma.done [#allocation4], 256
    $region17: #{tpu_custom_call.1} parent=1 // pred_fallthru
      _
    %52 = vsyncpa [#allocation3], 1
    %53 = vsyncpa [#allocation4], 1

</llo_original>
